<compile_context>
chip_gen: v6e
topology: v6e:2x2x1
jax: 0.10.0
libtpu: 0.0.40
codegen_flags: <defaults>
</compile_context>

<pallas_src>
import math
import functools

import jax
import jax.numpy as jnp
from jax.experimental import pallas as pl
from jax.experimental.pallas import tpu as pltpu


# ----------------------------------------------------------------------------
# Pallas kernel: fused (PE add + residual) + ONE fused bf16 QKV matmul.
# ----------------------------------------------------------------------------
def _qkv_fused_kernel(emb_ref, pe_ref, w_ref, b_ref, q_ref, k_ref, v_ref, *,
                      d_model):
    # emb_ref : (tile_s, D) f32  -- one batch element, tile_s sequence positions
    # pe_ref  : (tile_s, D) f32  -- positional encoding (re-used across batch)
    # w_ref   : (D, 3D)   bf16   -- [2*Wk^T | 2*Wq^T | 2*Wv^T], grid-invariant
    # b_ref   : (1, 3D)   f32    -- [bk | bq | bv]
    # q/k/v_ref: (tile_s, D)     -- outputs
    #
    # h = encoded + pe = 2*(emb + pe); the 2x is folded into w_ref.
    h = (emb_ref[...] + pe_ref[...]).astype(w_ref.dtype)
    qkv = jnp.dot(h, w_ref[...], preferred_element_type=jnp.float32) + b_ref[...]
    q_ref[...] = qkv[:, :d_model].astype(q_ref.dtype)
    k_ref[...] = qkv[:, d_model:2 * d_model].astype(k_ref.dtype)
    v_ref[...] = qkv[:, 2 * d_model:].astype(v_ref.dtype)


def _vmem_budget_bytes() -> int:
    """Generation-aware VMEM cap (~75% of physical VMEM)."""
    try:
        return int(0.75 * pltpu.get_tpu_info().vmem_capacity_bytes)
    except Exception:
        return 48 << 20   # conservative: 0.75 * 64 MiB (v7x per-core VMEM)


def _choose_tile_s(s, d, out_itemsize, vmem_budget, weight_bytes):
    """Largest seq tile (<=1024, multiple of 8, dividing S) fitting VMEM."""
    # Per seq row: f32 emb + f32 pe (double-buffered) + 3 outputs
    # (double-buffered) + f32 qkv intermediate + bf16 h.
    per_row = 2 * (2 * 4 * d) + 2 * (3 * out_itemsize * d) + 3 * 4 * d + 2 * d
    avail = vmem_budget - 2 * weight_bytes - (2 << 20)
    cap = int(max(8, min(1024, avail // per_row if per_row > 0 else 1024)))
    if s <= cap:
        return s
    if s % 8 != 0:
        return s                      # full-extent block is always legal
    t = (min(cap, s) // 8) * 8
    while t >= 8 and s % t != 0:
        t -= 8
    return t if t >= 8 else s


def _single_buffered(shape, index_map):
    """Grid-invariant operand: one VMEM buffer is enough (halves weight VMEM)."""
    try:
        return pl.BlockSpec(shape, index_map, pipeline_mode=pl.Buffered(1))
    except Exception:   # older JAX without pipeline_mode / Buffered
        return pl.BlockSpec(shape, index_map)


def qkv_pallas(emb_bsd, pe_sd, w_fused, b_fused, *, d_model,
               out_dtype=jnp.float32):
    # NOTE: pass out_dtype=jnp.bfloat16 if downstream accepts it — the output
    # is ~3/5 of per-step HBM bytes in the memory-bound regime.
    b, s, d = emb_bsd.shape
    d3 = w_fused.shape[1]
    out_itemsize = jnp.dtype(out_dtype).itemsize

    vmem_budget = _vmem_budget_bytes()
    weight_bytes = d * d3 * w_fused.dtype.itemsize + d3 * 4
    tile_s = _choose_tile_s(s, d, out_itemsize, vmem_budget, weight_bytes)

    # Seq OUTER, batch INNER -> the PE block index is constant across the inner
    # batch loop, so Pallas does not re-DMA it every step.
    grid = (s // tile_s, b)

    cost = pl.CostEstimate(
        flops=2 * b * s * d * d3,
        transcendentals=0,
        bytes_accessed=int(4 * b * s * d            # embedded activations
                           + 4 * s * d              # PE (streamed once per tile)
                           + w_fused.dtype.itemsize * d * d3 + 4 * d3
                           + out_itemsize * 3 * b * s * d),
    )

    out_sds = jax.ShapeDtypeStruct((b, s, d), out_dtype)
    out_spec = pl.BlockSpec((None, tile_s, d), lambda si, bi: (bi, si, 0))

    return pl.pallas_call(
        functools.partial(_qkv_fused_kernel, d_model=d_model),
        out_shape=(out_sds, out_sds, out_sds),
        grid=grid,
        in_specs=[
            # Activations: tiled over (batch, seq); batch dim squeezed away.
            pl.BlockSpec((None, tile_s, d), lambda si, bi: (bi, si, 0)),
            # PE: indexed by the seq axis only -> re-used across the batch loop.
            pl.BlockSpec((tile_s, d), lambda si, bi: (si, 0)),
            # Fused bf16 weights / f32 bias: grid-invariant, single-buffered.
            _single_buffered((d, d3), lambda si, bi: (0, 0)),
            _single_buffered((1, d3), lambda si, bi: (0, 0)),
        ],
        out_specs=(out_spec, out_spec, out_spec),
        compiler_params=pltpu.CompilerParams(
            dimension_semantics=("parallel", "parallel"),
            vmem_limit_bytes=vmem_budget,
        ),
        cost_estimate=cost,
    )(emb_bsd, pe_sd, w_fused, b_fused)


# ----------------------------------------------------------------------------
# Glue: positional-encoding table, parameters, forward pass.
# ----------------------------------------------------------------------------
def make_pos_encoding(seq_len: int, d_model: int) -> jnp.ndarray:
    """Standard sinusoidal PE table, shape (seq_len, d_model). Handles odd D."""
    pos = jnp.arange(seq_len, dtype=jnp.float32)[:, None]               # (S, 1)
    half = (d_model + 1) // 2
    exponent = jnp.arange(0, 2 * half, 2, dtype=jnp.float32) * (
        -math.log(10000.0) / d_model)
    val = pos * jnp.exp(exponent)[None, :]                              # (S, half)
    pe = jnp.zeros((seq_len, d_model), dtype=jnp.float32)
    n_sin = pe[:, 0::2].shape[1]
    n_cos = pe[:, 1::2].shape[1]
    pe = pe.at[:, 0::2].set(jnp.sin(val)[:, :n_sin])
    pe = pe.at[:, 1::2].set(jnp.cos(val)[:, :n_cos])
    return pe


def init_params(key, d_model: int, vocab_size: int):
    ks = jax.random.split(key, 7)
    bound = 1.0 / math.sqrt(d_model)
    return {
        "embed": jax.random.normal(ks[0], (vocab_size, d_model), jnp.float32),
        "wk": jax.random.uniform(ks[1], (d_model, d_model), jnp.float32,
                                 -bound, bound),
        "bk": jax.random.uniform(ks[2], (1, d_model), jnp.float32, -bound, bound),
        "wq": jax.random.uniform(ks[3], (d_model, d_model), jnp.float32,
                                 -bound, bound),
        "bq": jax.random.uniform(ks[4], (1, d_model), jnp.float32, -bound, bound),
        "wv": jax.random.uniform(ks[5], (d_model, d_model), jnp.float32,
                                 -bound, bound),
        "bv": jax.random.uniform(ks[6], (1, d_model), jnp.float32, -bound, bound),
    }


@functools.partial(jax.jit, static_argnames=("d_model",))
def model_forward(params, tokens, d_model):
    # tokens: (S, B) int32, seq-first like the PyTorch reference.
    s, b = tokens.shape

    # Gather embeddings in batch-major (B, S, D) so PE can be fed as (S, D).
    emb_bsd = jnp.take(params["embed"], tokens.T, axis=0)        # (B, S, D)
    pe = make_pos_encoding(s, d_model)                           # (S, D)

    # Reference quirk kept on purpose: q uses w_k, k uses w_q.
    # h = 2*(emb + pe): the 2x is folded into the fused bf16 weight slab here
    # (free — the concat already copies the weights).
    w_fused = (2.0 * jnp.concatenate(
        [params["wk"].T, params["wq"].T, params["wv"].T], axis=1)
               ).astype(jnp.bfloat16)                            # (D, 3D) bf16
    b_fused = jnp.concatenate(
        [params["bk"], params["bq"], params["bv"]], axis=1)      # (1, 3D) f32

    q, k, v = qkv_pallas(emb_bsd, pe, w_fused, b_fused, d_model=d_model)
    # NOTE: q/k/v are returned batch-major (B, S, D) — the kernel writes them
    # directly in that layout so the wrapper needs no HBM transpose / slices.
    # (The reference module never consumes them: it raises NotImplementedError.)
    return q, k, v


def reference_forward(params, tokens, d_model):
    """Pure-JAX reference with the same bf16 matmul inputs (f32 accumulation)."""
    emb = jnp.take(params["embed"], tokens, axis=0)              # (S, B, D)
    pe = make_pos_encoding(tokens.shape[0], d_model)[:, None, :]
    # encoded = (emb + pe) + emb ; h = encoded + pe = 2*(emb + pe)
    h = (emb + pe).astype(jnp.bfloat16).astype(jnp.float32)

    def proj(wname, bname):
        w2 = (2.0 * params[wname].T).astype(jnp.bfloat16).astype(jnp.float32)
        return h @ w2 + params[bname][0]

    # Reference quirk preserved: q uses w_k, k uses w_q.
    return proj("wk", "bk"), proj("wq", "bq"), proj("wv", "bv")   # (S, B, D)


if __name__ == "__main__":
    d_model, n_head, vocab_size = 32, 4, 50
    seq_len, batch = 8, 2
    assert d_model % n_head == 0

    key = jax.random.PRNGKey(0)
    pkey, tkey = jax.random.split(key)
    params = init_params(pkey, d_model, vocab_size)
    tokens = jax.random.randint(tkey, (seq_len, batch), 0, vocab_size,
                                dtype=jnp.int32)

    q, k, v = model_forward(params, tokens, d_model)
    jax.block_until_ready((q, k, v))

    qr, kr, vr = reference_forward(params, tokens, d_model)      # (S, B, D)
    assert q.shape == (batch, seq_len, d_model)
    assert jnp.allclose(q, jnp.transpose(qr, (1, 0, 2)), atol=1e-3)
    assert jnp.allclose(k, jnp.transpose(kr, (1, 0, 2)), atol=1e-3)
    assert jnp.allclose(v, jnp.transpose(vr, (1, 0, 2)), atol=1e-3)

    print("KERNEL_OK")
</pallas_src>

<mosaic_0001>
module attributes {stable_mosaic.version = 11 : i64} {
  func.func @_qkv_fused_kernel(%arg0: i32, %arg1: i32, %arg2: memref<1x8x32xf32, #tpu.memory_space<vmem>>, %arg3: memref<8x32xf32, #tpu.memory_space<vmem>>, %arg4: memref<32x96xbf16, #tpu.memory_space<vmem>>, %arg5: memref<1x96xf32, #tpu.memory_space<vmem>>, %arg6: memref<1x8x32xf32, #tpu.memory_space<vmem>>, %arg7: memref<1x8x32xf32, #tpu.memory_space<vmem>>, %arg8: memref<1x8x32xf32, #tpu.memory_space<vmem>>) attributes {dimension_semantics = [#tpu.dimension_semantics<parallel>, #tpu.dimension_semantics<parallel>], iteration_bounds = array<i64: 1, 2>, scalar_prefetch = 0 : i64, scratch_operands = 0 : i64, tpu.core_type = #tpu.core_type<tc>, window_params = [{transform_indices = @transform_0, window_bounds = array<i64: 1, 8, 32>}, {transform_indices = @transform_1, window_bounds = array<i64: 8, 32>}, {pipeline_mode = #tpu.pipeline_mode<synchronous>, transform_indices = @transform_2, window_bounds = array<i64: 32, 96>}, {pipeline_mode = #tpu.pipeline_mode<synchronous>, transform_indices = @transform_3, window_bounds = array<i64: 1, 96>}, {transform_indices = @transform_4, window_bounds = array<i64: 1, 8, 32>}, {transform_indices = @transform_5, window_bounds = array<i64: 1, 8, 32>}, {transform_indices = @transform_6, window_bounds = array<i64: 1, 8, 32>}]} {
    %c0 = arith.constant 0 : index
    %c0_0 = arith.constant 0 : index
    %c0_1 = arith.constant 0 : index
    %0 = vector.load %arg2[%c0, %c0_0, %c0_1] : memref<1x8x32xf32, #tpu.memory_space<vmem>>, vector<1x8x32xf32>
    %1 = vector.shape_cast %0 : vector<1x8x32xf32> to vector<8x32xf32>
    %c0_2 = arith.constant 0 : index
    %c0_3 = arith.constant 0 : index
    %2 = vector.load %arg3[%c0_2, %c0_3] : memref<8x32xf32, #tpu.memory_space<vmem>>, vector<8x32xf32>
    %3 = arith.addf %1, %2 : vector<8x32xf32>
    %4 = arith.truncf %3 : vector<8x32xf32> to vector<8x32xbf16>
    %c0_4 = arith.constant 0 : index
    %c0_5 = arith.constant 0 : index
    %5 = vector.load %arg4[%c0_4, %c0_5] : memref<32x96xbf16, #tpu.memory_space<vmem>>, vector<32x96xbf16>
    %cst = arith.constant dense<0.000000e+00> : vector<8x96xf32>
    %6 = tpu.matmul %4, %5, %cst {dimension_numbers = #tpu.dot_dimension_numbers<[1], [0], [0], [1], [0, 0, 1, 1], [], []>} : vector<8x32xbf16>, vector<32x96xbf16>, vector<8x96xf32> -> vector<8x96xf32>
    %c0_6 = arith.constant 0 : index
    %c0_7 = arith.constant 0 : index
    %7 = vector.load %arg5[%c0_6, %c0_7] : memref<1x96xf32, #tpu.memory_space<vmem>>, vector<1x96xf32>
    %8 = vector.broadcast %7 : vector<1x96xf32> to vector<8x96xf32>
    %9 = arith.addf %6, %8 : vector<8x96xf32>
    %10 = vector.extract_strided_slice %9 {offsets = [0, 0], sizes = [8, 32], strides = [1, 1]} : vector<8x96xf32> to vector<8x32xf32>
    %c0_8 = arith.constant 0 : index
    %c0_9 = arith.constant 0 : index
    %c0_10 = arith.constant 0 : index
    %11 = vector.load %arg6[%c0_8, %c0_9, %c0_10] : memref<1x8x32xf32, #tpu.memory_space<vmem>>, vector<1x8x32xf32>
    %12 = vector.shape_cast %11 : vector<1x8x32xf32> to vector<8x32xf32>
    %13 = vector.shape_cast %10 : vector<8x32xf32> to vector<1x8x32xf32>
    tpu.vector_store %arg6[%c0_8, %c0_9, %c0_10], %13 {strides = array<i32>} : memref<1x8x32xf32, #tpu.memory_space<vmem>>, vector<1x8x32xf32>,
    %14 = vector.extract_strided_slice %9 {offsets = [0, 32], sizes = [8, 32], strides = [1, 1]} : vector<8x96xf32> to vector<8x32xf32>
    %c0_11 = arith.constant 0 : index
    %c0_12 = arith.constant 0 : index
    %c0_13 = arith.constant 0 : index
    %15 = vector.load %arg7[%c0_11, %c0_12, %c0_13] : memref<1x8x32xf32, #tpu.memory_space<vmem>>, vector<1x8x32xf32>
    %16 = vector.shape_cast %15 : vector<1x8x32xf32> to vector<8x32xf32>
    %17 = vector.shape_cast %14 : vector<8x32xf32> to vector<1x8x32xf32>
    tpu.vector_store %arg7[%c0_11, %c0_12, %c0_13], %17 {strides = array<i32>} : memref<1x8x32xf32, #tpu.memory_space<vmem>>, vector<1x8x32xf32>,
    %18 = vector.extract_strided_slice %9 {offsets = [0, 64], sizes = [8, 32], strides = [1, 1]} : vector<8x96xf32> to vector<8x32xf32>
    %c0_14 = arith.constant 0 : index
    %c0_15 = arith.constant 0 : index
    %c0_16 = arith.constant 0 : index
    %19 = vector.load %arg8[%c0_14, %c0_15, %c0_16] : memref<1x8x32xf32, #tpu.memory_space<vmem>>, vector<1x8x32xf32>
    %20 = vector.shape_cast %19 : vector<1x8x32xf32> to vector<8x32xf32>
    %21 = vector.shape_cast %18 : vector<8x32xf32> to vector<1x8x32xf32>
    tpu.vector_store %arg8[%c0_14, %c0_15, %c0_16], %21 {strides = array<i32>} : memref<1x8x32xf32, #tpu.memory_space<vmem>>, vector<1x8x32xf32>,
    return
  }
  func.func @transform_0(%arg0: i32, %arg1: i32) -> (i32, i32, i32) {
    %c0_i32 = arith.constant 0 : i32
    %c0_i32_0 = arith.constant 0 : i32
    return %arg1, %arg0, %c0_i32 : i32, i32, i32
  }
  func.func @transform_1(%arg0: i32, %arg1: i32) -> (i32, i32) {
    %c0_i32 = arith.constant 0 : i32
    %c0_i32_0 = arith.constant 0 : i32
    return %arg0, %c0_i32 : i32, i32
  }
  func.func @transform_2(%arg0: i32, %arg1: i32) -> (i32, i32) {
    %c0_i32 = arith.constant 0 : i32
    %c0_i32_0 = arith.constant 0 : i32
    %c0_i32_1 = arith.constant 0 : i32
    return %c0_i32, %c0_i32_0 : i32, i32
  }
  func.func @transform_3(%arg0: i32, %arg1: i32) -> (i32, i32) {
    %c0_i32 = arith.constant 0 : i32
    %c0_i32_0 = arith.constant 0 : i32
    %c0_i32_1 = arith.constant 0 : i32
    return %c0_i32, %c0_i32_0 : i32, i32
  }
  func.func @transform_4(%arg0: i32, %arg1: i32) -> (i32, i32, i32) {
    %c0_i32 = arith.constant 0 : i32
    %c0_i32_0 = arith.constant 0 : i32
    return %arg1, %arg0, %c0_i32 : i32, i32, i32
  }
  func.func @transform_5(%arg0: i32, %arg1: i32) -> (i32, i32, i32) {
    %c0_i32 = arith.constant 0 : i32
    %c0_i32_0 = arith.constant 0 : i32
    return %arg1, %arg0, %c0_i32 : i32, i32, i32
  }
  func.func @transform_6(%arg0: i32, %arg1: i32) -> (i32, i32, i32) {
    %c0_i32 = arith.constant 0 : i32
    %c0_i32_0 = arith.constant 0 : i32
    return %arg1, %arg0, %c0_i32 : i32, i32, i32
  }
}

</mosaic_0001>

<llo_original>
// kernel: model_forward.1
$region0: #{model_forward.1}
  #allocation0 [shape = 'u32[]', space=smem, size = 0x4, offset = 0x4, fixed_abs, tag = 'smem constant byte address 0x4 - core index']
  #allocation1 [shape = 'u32[144,128]{1,0:T(1,128)}', space=vmem, size = 0x12000, scoped, tag = 'internal scratch']
  %s0 = inlined_call_operand.vmem [shape: f32[2,8,32], index: 0, kind: input, shape index: {}]
  %s1 = inlined_call_operand.vmem [shape: f32[8,32], index: 1, kind: input, shape index: {}]
  %s2 = inlined_call_operand.vmem [shape: bf16[32,96], index: 2, kind: input, shape index: {}]
  %s3 = inlined_call_operand.vmem [shape: f32[1,96], index: 3, kind: input, shape index: {}]
  %s4 = inlined_call_operand.hbm [shape: f32[2,8,32], index: 4, kind: output, shape index: {0}]
  %s5 = inlined_call_operand.hbm [shape: f32[2,8,32], index: 5, kind: output, shape index: {1}]
  %s6 = inlined_call_operand.hbm [shape: f32[2,8,32], index: 6, kind: output, shape index: {2}]
  %7 = xla_tuple %s4, %s5, %s6
  %s8 = sld [smem:[#allocation0]]
  $region65: #{model_forward.1} parent=0
    _
  %s10 = ssub.s32 1, %s8
  %s11 = scalar_select 0, %s10, %s8
  $region1: #{model_forward.1} parent=0
    #allocation2 [shape = 'u8[8192]{0}', space=vmem, size = 0x2000, scoped, tag = 'output window, operand 0']
    #allocation3 [shape = 's32[2]{0}', space=sflag, size = 0x8, scoped, tag = 'scoped memory for model_forward.1']
    #allocation4 [shape = 'u8[8192]{0}', space=vmem, size = 0x2000, scoped, tag = 'output window, operand 1']
    #allocation5 [shape = 's32[2]{0}', space=sflag, size = 0x8, scoped, tag = 'scoped memory for model_forward.1']
    #allocation6 [shape = 'u8[8192]{0}', space=vmem, size = 0x2000, scoped, tag = 'output window, operand 2']
    %12 = vsyncpa [#allocation3], 0
    %s13 = scalar_lea.sflag [#allocation3], 1
    %14 = vsyncpa %s13, 0
    %15 = vsyncpa [#allocation5], 0
    %s16 = scalar_lea.sflag [#allocation5], 1
    %17 = vsyncpa %s16, 0
    loop: start=0, step=1, limit=4
    $region2: #{model_forward.1} parent=1 // loop_pre_header
      _
    $region3: #{model_forward.1} parent=1 // loop_header
      %s19 = sphi 0, %s23
      %p20 = scmp.ge.s32.totalorder %s19, 4
      %s26 = sphi 0, %s38
      %s27 = sphi 0, %s34
      %s28 = sphi 0, %s26
      %s29 = sphi 0, %s27
      %s30 = sphi 0, %s28
      %s31 = sphi 0, %s29
      %s43 = sphi 0, %s45
      %s46 = sphi 0, %s43
      %s47 = sphi 0, %s46
      %s63 = sphi 0, %s47
      %s69 = sphi 0, %s71
      %s72 = sphi 0, %s69
      %s73 = sphi 0, %s72
      %s89 = sphi 0, %s73
      %s93 = sphi 0, %s93
      %s95 = sphi 0, %s93
      %s96 = sphi 0, %s95
      %s110 = sphi 0, %s96
      %s114 = sphi 0, %s114
      %s116 = sphi 0, %s114
      %s117 = sphi 0, %s116
      %s131 = sphi 0, %s117
      %s139 = sphi 0, %s141
      %s142 = sphi 0, %s139
      %s143 = sphi 0, %s142
      %s159 = sphi 0, %s143
      %s167 = sphi 0, %s169
      %s170 = sphi 0, %s167
      %s171 = sphi 0, %s170
      %s187 = sphi 0, %s171
      %s195 = sphi 0, %s197
      %s198 = sphi 0, %s195
      %s199 = sphi 0, %s198
      %s215 = sphi 0, %s199
    $region4: #{model_forward.1} parent=1 // loop_header_branch
      %22 = sbr.rel (%p20) target = $region8
    $region5: #{model_forward.1} parent=1 // loop_body
      %s24 = ssub.s32 %s19, 1
      %s25 = ssub.s32 %s19, 2
      %s32 = sadd.s32 1, %s27
      %p33 = scmp.ge.s32.totalorder %s32, 2
      %s34 = scalar_select %p33, 0, %s32
      %s35 = sadd.s32 1, %s26
      %s36 = scalar_select %p33, %s35, %s26
      %p37 = scmp.ge.s32.totalorder %s36, 1
      %s38 = scalar_select %p37, 0, %s36
      %s39 = ssub.s32 %s27, %s34
      %s40 = ssub.s32 %s26, %s38
      %s41 = sor.u32 %s39, %s40
      %p42 = scmp.eq.s32.totalorder %s41, 0
      %s44 = sadd.s32 %s43, 1
      %s45 = scalar_select %p42, %s43, %s44
      %p48 = pneg %p42
      %p49 = scmp.eq.s32.totalorder %s19, 1
      %p50 = por %p48, %p49
      %p51 = scmp.ne.s32.totalorder %s43, %s46
      %p52 = scmp.eq.s32.totalorder %s19, 0
      %p53 = por %p51, %p52
      %p54 = scmp.ne.s32.totalorder %s43, %s46
      %p55 = scmp.eq.s32.totalorder %s24, 1
      %p56 = por %p54, %p55
      %p57 = scmp.ne.s32.totalorder %s46, %s47
      %p58 = scmp.eq.s32.totalorder %s24, 0
      %p59 = por %p57, %p58
      %p60 = scmp.ne.s32.totalorder %s46, %s47
      %p61 = scmp.eq.s32.totalorder %s25, 1
      %p62 = por %p60, %p61
      %p64 = scmp.ne.s32.totalorder %s47, %s63
      %p65 = scmp.eq.s32.totalorder %s25, 0
      %p66 = por %p64, %p65
      %s67 = ssub.s32 %s26, %s38
      %p68 = scmp.eq.s32.totalorder %s67, 0
      %s70 = sadd.s32 %s69, 1
      %s71 = scalar_select %p68, %s69, %s70
      %p74 = pneg %p68
      %p75 = scmp.eq.s32.totalorder %s19, 1
      %p76 = por %p74, %p75
      %p77 = scmp.ne.s32.totalorder %s69, %s72
      %p78 = scmp.eq.s32.totalorder %s19, 0
      %p79 = por %p77, %p78
      %p80 = scmp.ne.s32.totalorder %s69, %s72
      %p81 = scmp.eq.s32.totalorder %s24, 1
      %p82 = por %p80, %p81
      %p83 = scmp.ne.s32.totalorder %s72, %s73
      %p84 = scmp.eq.s32.totalorder %s24, 0
      %p85 = por %p83, %p84
      %p86 = scmp.ne.s32.totalorder %s72, %s73
      %p87 = scmp.eq.s32.totalorder %s25, 1
      %p88 = por %p86, %p87
      %p90 = scmp.ne.s32.totalorder %s73, %s89
      %p91 = scmp.eq.s32.totalorder %s25, 0
      %p92 = por %p90, %p91
      %s94 = sadd.s32 %s93, 1
      %p97 = scmp.eq.s32.totalorder %s19, 1
      %p98 = scmp.ne.s32.totalorder %s93, %s95
      %p99 = scmp.eq.s32.totalorder %s19, 0
      %p100 = por %p98, %p99
      %p101 = scmp.ne.s32.totalorder %s93, %s95
      %p102 = scmp.eq.s32.totalorder %s24, 1
      %p103 = por %p101, %p102
      %p104 = scmp.ne.s32.totalorder %s95, %s96
      %p105 = scmp.eq.s32.totalorder %s24, 0
      %p106 = por %p104, %p105
      %p107 = scmp.ne.s32.totalorder %s95, %s96
      %p108 = scmp.eq.s32.totalorder %s25, 1
      %p109 = por %p107, %p108
      %p111 = scmp.ne.s32.totalorder %s96, %s110
      %p112 = scmp.eq.s32.totalorder %s25, 0
      %p113 = por %p111, %p112
      %s115 = sadd.s32 %s114, 1
      %p118 = scmp.eq.s32.totalorder %s19, 1
      %p119 = scmp.ne.s32.totalorder %s114, %s116
      %p120 = scmp.eq.s32.totalorder %s19, 0
      %p121 = por %p119, %p120
      %p122 = scmp.ne.s32.totalorder %s114, %s116
      %p123 = scmp.eq.s32.totalorder %s24, 1
      %p124 = por %p122, %p123
      %p125 = scmp.ne.s32.totalorder %s116, %s117
      %p126 = scmp.eq.s32.totalorder %s24, 0
      %p127 = por %p125, %p126
      %p128 = scmp.ne.s32.totalorder %s116, %s117
      %p129 = scmp.eq.s32.totalorder %s25, 1
      %p130 = por %p128, %p129
      %p132 = scmp.ne.s32.totalorder %s117, %s131
      %p133 = scmp.eq.s32.totalorder %s25, 0
      %p134 = por %p132, %p133
      %s135 = ssub.s32 %s27, %s34
      %s136 = ssub.s32 %s26, %s38
      %s137 = sor.u32 %s135, %s136
      %p138 = scmp.eq.s32.totalorder %s137, 0
      %s140 = sadd.s32 %s139, 1
      %s141 = scalar_select %p138, %s139, %s140
      %p144 = pneg %p138
      %p145 = scmp.eq.s32.totalorder %s19, 1
      %p146 = por %p144, %p145
      %p147 = scmp.ne.s32.totalorder %s139, %s142
      %p148 = scmp.eq.s32.totalorder %s19, 0
      %p149 = por %p147, %p148
      %p150 = scmp.ne.s32.totalorder %s139, %s142
      %p151 = scmp.eq.s32.totalorder %s24, 1
      %p152 = por %p150, %p151
      %p153 = scmp.ne.s32.totalorder %s142, %s143
      %p154 = scmp.eq.s32.totalorder %s24, 0
      %p155 = por %p153, %p154
      %p156 = scmp.ne.s32.totalorder %s142, %s143
      %p157 = scmp.eq.s32.totalorder %s25, 1
      %p158 = por %p156, %p157
      %p160 = scmp.ne.s32.totalorder %s143, %s159
      %p161 = scmp.eq.s32.totalorder %s25, 0
      %p162 = por %p160, %p161
      %s163 = ssub.s32 %s27, %s34
      %s164 = ssub.s32 %s26, %s38
      %s165 = sor.u32 %s163, %s164
      %p166 = scmp.eq.s32.totalorder %s165, 0
      %s168 = sadd.s32 %s167, 1
      %s169 = scalar_select %p166, %s167, %s168
      %p172 = pneg %p166
      %p173 = scmp.eq.s32.totalorder %s19, 1
      %p174 = por %p172, %p173
      %p175 = scmp.ne.s32.totalorder %s167, %s170
      %p176 = scmp.eq.s32.totalorder %s19, 0
      %p177 = por %p175, %p176
      %p178 = scmp.ne.s32.totalorder %s167, %s170
      %p179 = scmp.eq.s32.totalorder %s24, 1
      %p180 = por %p178, %p179
      %p181 = scmp.ne.s32.totalorder %s170, %s171
      %p182 = scmp.eq.s32.totalorder %s24, 0
      %p183 = por %p181, %p182
      %p184 = scmp.ne.s32.totalorder %s170, %s171
      %p185 = scmp.eq.s32.totalorder %s25, 1
      %p186 = por %p184, %p185
      %p188 = scmp.ne.s32.totalorder %s171, %s187
      %p189 = scmp.eq.s32.totalorder %s25, 0
      %p190 = por %p188, %p189
      %s191 = ssub.s32 %s27, %s34
      %s192 = ssub.s32 %s26, %s38
      %s193 = sor.u32 %s191, %s192
      %p194 = scmp.eq.s32.totalorder %s193, 0
      %s196 = sadd.s32 %s195, 1
      %s197 = scalar_select %p194, %s195, %s196
      %p200 = pneg %p194
      %p201 = scmp.eq.s32.totalorder %s19, 1
      %p202 = por %p200, %p201
      %p203 = scmp.ne.s32.totalorder %s195, %s198
      %p204 = scmp.eq.s32.totalorder %s19, 0
      %p205 = por %p203, %p204
      %p206 = scmp.ne.s32.totalorder %s195, %s198
      %p207 = scmp.eq.s32.totalorder %s24, 1
      %p208 = por %p206, %p207
      %p209 = scmp.ne.s32.totalorder %s198, %s199
      %p210 = scmp.eq.s32.totalorder %s24, 0
      %p211 = por %p209, %p210
      %p212 = scmp.ne.s32.totalorder %s198, %s199
      %p213 = scmp.eq.s32.totalorder %s25, 1
      %p214 = por %p212, %p213
      %p216 = scmp.ne.s32.totalorder %s199, %s215
      %p217 = scmp.eq.s32.totalorder %s25, 0
      %p218 = por %p216, %p217
      %p219 = scmp.le.s32.totalorder 1, %s19
      %p220 = scmp.lt.s32.totalorder %s19, 3
      %p221 = pnand %p219, %p220
      %p222 = pneg %p221
      // Predicated region
      $region9: #{model_forward.1} parent=5 // pred_check
        _
      $region10: #{model_forward.1} parent=5 // pred_check_branch
        %224 = sbr.rel (%p221) target = $region12
      $region11: #{model_forward.1} parent=5 // pred_region
        %s225 = ssub.s32 %s19, 1
        // Predicated region
        $region13: #{model_forward.1} parent=11 // pred_check
          %p226 = pneg %p85
        $region14: #{model_forward.1} parent=11 // pred_check_branch
          %228 = sbr.rel (%p226) target = $region16
        $region15: #{model_forward.1} parent=11 // pred_region
          %p229 = scmp.lt.s32.totalorder %s28, 0
          %s230 = scalar_select %p229, %s28, 0
          %s231 = smul.addr %s230, 8
          %s232 = scalar_lea.vmem %s1, %s231
        $region16: #{model_forward.1} parent=11 // pred_fallthru
          _
        // Predicated region
        $region17: #{model_forward.1} parent=11 // pred_check
          %p233 = pneg %p106
        $region18: #{model_forward.1} parent=11 // pred_check_branch
          %235 = sbr.rel (%p233) target = $region20
        $region19: #{model_forward.1} parent=11 // pred_region
          _
        $region20: #{model_forward.1} parent=11 // pred_fallthru
          _
        // Predicated region
        $region21: #{model_forward.1} parent=11 // pred_check
          %p236 = pneg %p127
        $region22: #{model_forward.1} parent=11 // pred_check_branch
          %238 = sbr.rel (%p236) target = $region24
        $region23: #{model_forward.1} parent=11 // pred_region
          _
        $region24: #{model_forward.1} parent=11 // pred_fallthru
          _
      $region12: #{model_forward.1} parent=5 // pred_fallthru
        _
      %p239 = scmp.lt.s32.totalorder %s19, 2
      // Predicated region
      $region25: #{model_forward.1} parent=5 // pred_check
        %p240 = pneg %p239
      $region26: #{model_forward.1} parent=5 // pred_check_branch
        %242 = sbr.rel (%p240) target = $region28
      $region27: #{model_forward.1} parent=5 // pred_region
        // Predicated region
        $region29: #{model_forward.1} parent=27 // pred_check
          %p243 = pneg %p53
        $region30: #{model_forward.1} parent=27 // pred_check_branch
          %245 = sbr.rel (%p243) target = $region32
        $region31: #{model_forward.1} parent=27 // pred_region
          %p246 = scmp.lt.s32.totalorder %s27, 1
          %s247 = scalar_select %p246, %s27, 1
          %p248 = scmp.lt.s32.totalorder %s26, 0
          %s249 = scalar_select %p248, %s26, 0
          %s250 = sadd.s32 %s249, %s247
          %s251 = smul.addr %s250, 8
          %s252 = scalar_lea.vmem %s0, %s251
        $region32: #{model_forward.1} parent=27 // pred_fallthru
          _
      $region28: #{model_forward.1} parent=5 // pred_fallthru
        _
      %p253 = scmp.le.s32.totalorder 1, %s19
      %p254 = scmp.lt.s32.totalorder %s19, 3
      %p255 = pnand %p253, %p254
      %p256 = pneg %p255
      // Predicated region
      $region33: #{model_forward.1} parent=5 // pred_check
        _
      $region34: #{model_forward.1} parent=5 // pred_check_branch
        %258 = sbr.rel (%p255) target = $region36
      $region35: #{model_forward.1} parent=5 // pred_region
        %s259 = ssub.s32 %s19, 1
        %p260 = scmp.lt.s32.totalorder %s29, 1
        %s261 = scalar_select %p260, %s29, 1
        %p262 = scmp.lt.s32.totalorder %s28, 0
        %s263 = scalar_select %p262, %s28, 0
        %s264 = sadd.s32 %s263, %s261
        %s265 = smul.addr %s264, 8
        %s266 = scalar_lea.vmem %s0, %s265
        %p267 = pneg %p59
        %p268 = pneg %p56
        %p269 = scmp.lt.s32.totalorder %s28, 0
        %s270 = scalar_select %p269, %s28, 0
        %s271 = smul.addr %s270, 8
        %s272 = scalar_lea.vmem %s1, %s271
        %p273 = pneg %p85
        %p274 = pneg %p82
        %p275 = pneg %p106
        %p276 = pneg %p103
        %p277 = pneg %p127
        %p278 = pneg %p124
        %p279 = pneg %p155
        %p280 = pneg %p152
        %s281 = sand.u32 %s142, 1
        %s282 = scalar_lea.sflag [#allocation3], %s281
        %s283 = sand.u32 %s142, 1
        %s284 = smul.addr %s283, 8
        %s285 = scalar_lea.vmem [#allocation2], %s284
        %p286 = pneg %p183
        %p287 = pneg %p180
        %s288 = sand.u32 %s24, 1
        %s289 = scalar_lea.sflag [#allocation5], %s288
        %s290 = sand.u32 %s170, 1
        %s291 = smul.addr %s290, 8
        %s292 = scalar_lea.vmem [#allocation4], %s291
        %p293 = pneg %p211
        %p294 = pneg %p208
        %s295 = sand.u32 %s24, 1
        %s296 = scalar_lea.sflag [#allocation5], %s295
        %s297 = sand.u32 %s198, 1
        %s298 = smul.addr %s297, 8
        %s299 = scalar_lea.vmem [#allocation6], %s298
        %p300 = scmp.lt.s32.totalorder %s29, 1
        %s301 = scalar_select %p300, %s29, 1
        %p302 = scmp.lt.s32.totalorder %s28, 0
        %s303 = scalar_select %p302, %s28, 0
        %s304 = sadd.s32 %s303, %s301
        %s305 = smul.addr %s304, 8
        %s306 = scalar_lea.vmem %s0, %s305
        %p307 = scmp.lt.s32.totalorder %s28, 0
        %s308 = scalar_select %p307, %s28, 0
        %s309 = smul.addr %s308, 8
        %s310 = scalar_lea.vmem %s1, %s309
        %v312 = vld [vmem:[%s306] sm:$0xff]
        %v313 = vld [vmem:[%s310] sm:$0xff]
        %v314 = vadd.f32 %v312, %v313
        %v315 = vpack.c.bf16 %v314, %v314
        %v316 = vld [vmem:[%s2] sm:$0xf]
        %v317 = vld [vmem:[%s2 + $0x4] sm:$0xf]
        %v318 = vld [vmem:[%s2 + $0x8] sm:$0xf]
        %v319 = vld [vmem:[%s2 + $0xc] sm:$0xf]
        %v320 = vld [vmem:[%s3] sm:$0x1]
        %v322 = vlaneseq
        %v323 = vshrl.u32 %v322, 7
        %v324 = vsub.s32 0, %v323
        %v325 = vrot.slane %v320, %v324
        %v331 = vunpack.c.l.b16 %v316
        %v332 = vunpack.c.l.b16 %v317
        %v333 = vunpack.c.l.b16 %v318
        %v334 = vunpack.c.l.b16 %v319
        %v335 = vpack.c.b16 %v332, %v331
        %v336 = vpack.c.b16 %v334, %v333
        %vm339 = vcmask 261120
        %v341 = vsel %vm339, %v315, 0
        %343 = vmatprep.subr.bf16.mxu0 0
        %344 = vmatpush1.bf16.msra.mxu0 0
        %345 = vmatprep.subr.bf16.mxu0 0
        %346 = vmatpush1.bf16.msra.mxu0 0
        %347 = vmatprep.subr.bf16.mxu0 0
        %348 = vmatpush1.bf16.msra.mxu0 0
        %349 = vmatprep.subr.bf16.mxu0 0
        %350 = vmatpush1.bf16.msra.mxu0 0
        %351 = vmatprep.subr.bf16.mxu0 0
        %352 = vmatpush1.bf16.msra.mxu0 0
        %353 = vmatprep.subr.bf16.mxu0 0
        %354 = vmatpush1.bf16.msra.mxu0 0
        %355 = vmatprep.subr.bf16.mxu0 0
        %356 = vmatpush1.bf16.msra.mxu0 %v336
        %357 = vmatprep.subr.bf16.mxu0 0
        %358 = vmatpush1.bf16.msra.mxu0 %v335
        %359 = vmatprep.subr.bf16.mxu0 0
        %360 = vmatpush2.bf16.msra.mxu0 0
        %361 = vmatprep.subr.bf16.mxu0 0
        %362 = vmatpush2.bf16.msra.mxu0 0
        %363 = vmatprep.subr.bf16.mxu0 0
        %364 = vmatpush2.bf16.msra.mxu0 0
        %365 = vmatprep.subr.bf16.mxu0 0
        %366 = vmatpush2.bf16.msra.mxu0 0
        %367 = vmatprep.subr.bf16.mxu0 0
        %368 = vmatpush2.bf16.msra.mxu0 0
        %369 = vmatprep.subr.bf16.mxu0 0
        %370 = vmatpush2.bf16.msra.mxu0 0
        %371 = vmatprep.subr.bf16.mxu0 0
        %372 = vmatpush2.bf16.msra.mxu0 0
        %373 = vmatprep.subr.bf16.mxu0 0
        %374 = vmatpush2.bf16.msra.mxu0 0
        %375 = vmatprep.mubr.bf16.mxu0 0
        %376 = vmatmul.mubr.bf16.gmra.mxu0 %v341
        %v377 = vpop.f32.mrf.mxu0
        %v378 = vadd.f32 %v325, %v377
        %v379 = vpop.f32.mrf.mxu0
        %v380 = vpop.f32.mrf.mxu0
        %v381 = vpop.f32.mrf.mxu0
        %382 = vdwg.mxu0
        %383 = vst.msk [vmem:[%s285] sm:$0xff] %vm339, %v378
        %385 = vrot.lane.b32.xlu0 %v378, 96
        %v386 = vpop.permute.xlu0 %385
        %388 = vst.msk [vmem:[%s292] sm:$0xff] %vm339, %v386
        %389 = vrot.lane.b32.xlu0 %v378, 64
        %v390 = vpop.permute.xlu0 %389
        %392 = vst.msk [vmem:[%s299] sm:$0xff] %vm339, %v390
        %s393 = sand.u32 %s142, 1
        %s394 = scalar_lea.sflag [#allocation3], %s393
        %s395 = sand.u32 %s142, 1
        %s396 = smul.addr %s395, 8
        %s397 = scalar_lea.vmem [#allocation2], %s396
        %s398 = sand.u32 %s24, 1
        %s399 = scalar_lea.sflag [#allocation5], %s398
        %s400 = sand.u32 %s170, 1
        %s401 = smul.addr %s400, 8
        %s402 = scalar_lea.vmem [#allocation4], %s401
        %s403 = sand.u32 %s24, 1
        %s404 = scalar_lea.sflag [#allocation5], %s403
        %s405 = sand.u32 %s198, 1
        %s406 = smul.addr %s405, 8
        %s407 = scalar_lea.vmem [#allocation6], %s406
        // Predicated region
        $region37: #{model_forward.1} parent=35 // pred_check
          %p408 = pneg %p152
        $region38: #{model_forward.1} parent=35 // pred_check_branch
          %410 = sbr.rel (%p408) target = $region40
        $region39: #{model_forward.1} parent=35 // pred_region
          %s412 = ssub.s32 128, 128
          %413 = vsyncadd %s394, %s412
          %s414 = sadd.s32 %s28, %s29
          %s415 = smul.addr %s414, 128
          %s416 = scalar_lea.hbm %s4, %s415
          %s418 = sshll.u32 %s397, 4
          %s419 = int_to_ptr.vmem [resolvable:$true] %s418
          %421 = dma.vmem_to_hbm [thread:$0]  %s419, 128, %s416, %s394
        $region40: #{model_forward.1} parent=35 // pred_fallthru
          _
        // Predicated region
        $region41: #{model_forward.1} parent=35 // pred_check
          %p422 = pneg %p180
        $region42: #{model_forward.1} parent=35 // pred_check_branch
          %424 = sbr.rel (%p422) target = $region44
        $region43: #{model_forward.1} parent=35 // pred_region
          %s426 = ssub.s32 128, 128
          %427 = vsyncadd %s399, %s426
          %s428 = sadd.s32 %s28, %s29
          %s429 = smul.addr %s428, 128
          %s430 = scalar_lea.hbm %s5, %s429
          %s432 = sshll.u32 %s402, 4
          %s433 = int_to_ptr.vmem [resolvable:$true] %s432
          %435 = dma.vmem_to_hbm [thread:$0]  %s433, 128, %s430, %s399
        $region44: #{model_forward.1} parent=35 // pred_fallthru
          _
        // Predicated region
        $region45: #{model_forward.1} parent=35 // pred_check
          %p436 = pneg %p208
        $region46: #{model_forward.1} parent=35 // pred_check_branch
          %438 = sbr.rel (%p436) target = $region48
        $region47: #{model_forward.1} parent=35 // pred_region
          %s440 = ssub.s32 128, 128
          %441 = vsyncadd %s404, %s440
          %s442 = sadd.s32 %s28, %s29
          %s443 = smul.addr %s442, 128
          %s444 = scalar_lea.hbm %s6, %s443
          %s446 = sshll.u32 %s407, 4
          %s447 = int_to_ptr.vmem [resolvable:$true] %s446
          %449 = dma.vmem_to_hbm [thread:$0]  %s447, 128, %s444, %s404
        $region48: #{model_forward.1} parent=35 // pred_fallthru
          _
      $region36: #{model_forward.1} parent=5 // pred_fallthru
        _
      %p450 = scmp.le.s32.totalorder 2, %s19
      // Predicated region
      $region49: #{model_forward.1} parent=5 // pred_check
        %p451 = pneg %p450
      $region50: #{model_forward.1} parent=5 // pred_check_branch
        %453 = sbr.rel (%p451) target = $region52
      $region51: #{model_forward.1} parent=5 // pred_region
        %s454 = ssub.s32 %s19, 2
        // Predicated region
        $region53: #{model_forward.1} parent=51 // pred_check
          %p455 = pneg %p158
        $region54: #{model_forward.1} parent=51 // pred_check_branch
          %457 = sbr.rel (%p455) target = $region56
        $region55: #{model_forward.1} parent=51 // pred_region
          %s458 = sand.u32 %s143, 1
          %s459 = scalar_lea.sflag [#allocation3], %s458
          %s460 = sand.u32 %s143, 1
          %s461 = smul.addr %s460, 8
          %s462 = scalar_lea.vmem [#allocation2], %s461
          %463 = dma.done %s459, 128
        $region56: #{model_forward.1} parent=51 // pred_fallthru
          _
        // Predicated region
        $region57: #{model_forward.1} parent=51 // pred_check
          %p464 = pneg %p186
        $region58: #{model_forward.1} parent=51 // pred_check_branch
          %466 = sbr.rel (%p464) target = $region60
        $region59: #{model_forward.1} parent=51 // pred_region
          %s467 = sand.u32 %s25, 1
          %s468 = scalar_lea.sflag [#allocation5], %s467
          %s469 = sand.u32 %s171, 1
          %s470 = smul.addr %s469, 8
          %s471 = scalar_lea.vmem [#allocation4], %s470
          %472 = dma.done %s468, 128
        $region60: #{model_forward.1} parent=51 // pred_fallthru
          _
        // Predicated region
        $region61: #{model_forward.1} parent=51 // pred_check
          %p473 = pneg %p214
        $region62: #{model_forward.1} parent=51 // pred_check_branch
          %475 = sbr.rel (%p473) target = $region64
        $region63: #{model_forward.1} parent=51 // pred_region
          %s476 = sand.u32 %s25, 1
          %s477 = scalar_lea.sflag [#allocation5], %s476
          %s478 = sand.u32 %s199, 1
          %s479 = smul.addr %s478, 8
          %s480 = scalar_lea.vmem [#allocation6], %s479
          %481 = dma.done %s477, 128
        $region64: #{model_forward.1} parent=51 // pred_fallthru
          _
      $region52: #{model_forward.1} parent=5 // pred_fallthru
        _
    $region6: #{model_forward.1} parent=1 // loop_footer
      %s23 = sadd.s32 1, %s19
    $region7: #{model_forward.1} parent=1 // loop_footer_branch
      %18 = sbr.rel target = $region3
    $region8: #{model_forward.1} parent=1 // loop_exit
      _
    %482 = vsyncpa [#allocation3], 1
    %s483 = scalar_lea.sflag [#allocation3], 1
    %484 = vsyncpa %s483, 1
    %485 = vsyncpa [#allocation5], 1
    %s486 = scalar_lea.sflag [#allocation5], 1
    %487 = vsyncpa %s486, 1

</llo_original>
